<compile_context>
chip_gen: v7x
topology: tpu7x:2x2x1
jax: 0.10.0
libtpu: 0.0.40
codegen_flags: <defaults>
</compile_context>

<pallas_src>
import math

import jax
import jax.numpy as jnp
from jax import lax
from jax.experimental import pallas as pl
from jax.experimental.pallas import tpu as pltpu

D_K = 64
D_V = 64


def _sdpa_kernel(q_ref, k_ref, v_ref, mask_ref, ctx_ref, attn_ref):
    # q_ref: (G, TQ, DK) bf16, k_ref: (G, S, DK) bf16, v_ref: (G, S, DV) bf16
    # mask_ref: (G, 1, S) or (G, TQ, S) int8 (nonzero == masked)
    # ctx_ref: (1, TQ, G*DV) f32 (heads packed along lanes), attn_ref: (G, TQ, S)
    G = q_ref.shape[0]
    dk = q_ref.shape[-1]
    scale = 1.0 / math.sqrt(dk)

    # Scale the small Q tile (G*TQ*dk muls) instead of the (G,TQ,S) scores.
    q = q_ref[...] * scale
    k = k_ref[...]
    v = v_ref[...]
    m = mask_ref[...]

    # scores = (Q/sqrt(dk)) @ K^T, batched over the G packed heads,
    # contraction on the last dim of both operands -> no K transpose.
    scores = lax.dot_general(
        q, k,
        dimension_numbers=(((2,), (2,)), ((0,), (0,))),
        preferred_element_type=jnp.float32,
    )

    # masked_fill_(attn_mask, -1e9); broadcasts over queries for padding masks.
    scores = jnp.where(m != 0, jnp.float32(-1e9), scores)

    # Numerically stable softmax over keys (matches torch.Softmax(dim=-1)).
    s_max = jnp.max(scores, axis=-1, keepdims=True)
    p = jnp.exp(scores - s_max)
    denom = jnp.sum(p, axis=-1, keepdims=True)
    attn = p * pl.reciprocal(denom, approx=True)

    attn_ref[...] = attn.astype(attn_ref.dtype)

    # context = attn @ V (bf16 operands on the MXU, f32 accumulation).
    ctx = lax.dot_general(
        attn.astype(v.dtype), v,
        dimension_numbers=(((2,), (1,)), ((0,), (0,))),
        preferred_element_type=jnp.float32,
    )  # (G, TQ, DV)

    # Lane-dense store: pack the G heads along the last dim -> (TQ, G*DV).
    ctx_ref[0] = jnp.concatenate([ctx[g] for g in range(G)], axis=-1).astype(
        ctx_ref.dtype)


def _divisors_desc(n):
    return [d for d in range(n, 0, -1) if n % d == 0]


def _vmem_limits():
    """(vmem_limit_bytes, block_budget_bytes) tuned to the chip generation."""
    try:
        cap = int(pltpu.get_tpu_info().vmem_capacity_bytes)
    except Exception:
        cap = 64 * 1024 * 1024  # conservative default (v7x per-TC VMEM)
    limit = min(int(cap * 0.75), cap - 8 * 1024 * 1024)
    block_budget = int(limit * 0.85)   # headroom for internal compiler scratch
    return limit, block_budget


def _pick_tiles(bh, s, dk, dv, full_mask, attn_itemsize, block_budget):
    """Largest (G heads/step, TQ query tile) that fits the VMEM budget.

    Budget = double-buffered blocks + f32 softmax intermediates.
    """
    align = 32 if full_mask else 16
    tq_cands = [d for d in _divisors_desc(s)
                if d <= 512 and (d == s or d % align == 0)]
    if not tq_cands:
        tq_cands = [s]
    g_cands = [d for d in _divisors_desc(bh) if d <= 16]

    best = None
    for g in g_cands:
        for tq in tq_cands:  # descending; first fit is largest TQ for this g
            qkv = g * tq * dk * 2 + g * s * dk * 2 + g * s * dv * 2   # bf16
            mask_b = g * (tq if full_mask else 1) * s                 # int8
            out_b = tq * g * dv * 4 + g * tq * s * attn_itemsize      # ctx+attn
            blocks = 2 * (qkv + mask_b + out_b)                       # dbl-buffered
            # scores(f32) + p(f32) + attn bf16 recast + ctx f32 accumulation
            scratch = g * tq * s * (4 + 4 + 2) + g * tq * dv * 4
            if blocks + scratch <= block_budget:
                if best is None or g * tq > best[0] * best[1]:
                    best = (g, tq)
                break
    if best is None:
        best = (1, tq_cands[-1])
    return best


def _is_broadcast_padding(mask4):
    """True iff every query row of the (B,H,S,S) mask is identical (concrete only)."""
    try:
        return bool(jnp.all(mask4 == mask4[:, :, :1, :]))
    except Exception:  # traced / abstract value -> keep the general path
        return False


def scaled_dot_product_attention(Q, K, V, attn_mask, *, attn_dtype=jnp.bfloat16):
    """Q, K: [B, H, S, d_k]; V: [B, H, S, d_v].

    attn_mask (True/nonzero == masked) may be:
      * [B, S], [B, 1, 1, S], [B, H, 1, S]  key-padding mask (fast O(S) path)
      * [B, H, S, S] (or [B, 1, S, S])      full mask (general path; collapsed
                                            to the fast path when it is a
                                            concrete broadcast padding mask)

    Returns (context [B, H, S, d_v] f32, attn [B, H, S, S] in `attn_dtype`).
    attn defaults to bf16 to halve its HBM writeback; pass attn_dtype=f32 for
    exact PyTorch-output dtype.
    """
    B, H, S, dk = Q.shape
    dv = V.shape[-1]
    BH = B * H

    q = Q.reshape(BH, S, dk).astype(jnp.bfloat16)
    k = K.reshape(BH, S, dk).astype(jnp.bfloat16)
    v = V.reshape(BH, S, dv).astype(jnp.bfloat16)

    mask = jnp.asarray(attn_mask)
    if mask.ndim == 2:
        if mask.shape != (B, S):
            raise ValueError(f"unsupported attn_mask shape {mask.shape}")
        m4 = jnp.broadcast_to(mask[:, None, None, :], (B, H, 1, S))
    elif mask.ndim == 4:
        if mask.shape[2] not in (1, S) or mask.shape[3] != S:
            raise ValueError(f"unsupported attn_mask shape {mask.shape}")
        m4 = mask
    else:
        raise ValueError(f"unsupported attn_mask shape {mask.shape}")

    # Common BERT case: full mask that is really a broadcast key-padding mask.
    if m4.shape[2] == S and S > 1 and _is_broadcast_padding(m4):
        m4 = m4[:, :, :1, :]

    if m4.shape[2] == 1:
        m = jnp.broadcast_to(m4, (B, H, 1, S)).reshape(BH, 1, S)
        full_mask = False
    else:
        m = jnp.broadcast_to(m4, (B, H, S, S)).reshape(BH, S, S)
        full_mask = True
    m = m.astype(jnp.int8)

    vmem_limit, block_budget = _vmem_limits()
    G, TQ = _pick_tiles(BH, S, dk, dv, full_mask,
                        jnp.dtype(attn_dtype).itemsize, block_budget)
    grid = (BH // G, S // TQ)

    if full_mask:
        mask_spec = pl.BlockSpec((G, TQ, S), lambda i, j: (i, j, 0))
    else:
        mask_spec = pl.BlockSpec((G, 1, S), lambda i, j: (i, 0, 0))

    grid_spec = pltpu.PrefetchScalarGridSpec(
        num_scalar_prefetch=0,
        grid=grid,
        in_specs=[
            pl.BlockSpec((G, TQ, dk), lambda i, j: (i, j, 0)),   # Q (query-tiled)
            pl.BlockSpec((G, S, dk), lambda i, j: (i, 0, 0)),    # K (resident)
            pl.BlockSpec((G, S, dv), lambda i, j: (i, 0, 0)),    # V (resident)
            mask_spec,
        ],
        out_specs=[
            pl.BlockSpec((1, TQ, G * dv), lambda i, j: (i, j, 0)),  # packed ctx
            pl.BlockSpec((G, TQ, S), lambda i, j: (i, j, 0)),       # attn probs
        ],
    )

    ctx_packed, attn = pl.pallas_call(
        _sdpa_kernel,
        out_shape=(
            jax.ShapeDtypeStruct((BH // G, S, G * dv), jnp.float32),
            jax.ShapeDtypeStruct((BH, S, S), attn_dtype),
        ),
        grid_spec=grid_spec,
        compiler_params=pltpu.CompilerParams(
            # head-group axis parallel (megacore on v7x); query axis sequential
            dimension_semantics=("parallel", "arbitrary"),
            vmem_limit_bytes=vmem_limit,
        ),
    )(q, k, v, m)

    # Un-pack the lane-dense context: (BH//G, S, G*dv) -> (B, H, S, dv).
    context = ctx_packed.reshape(BH // G, S, G, dv)
    context = context.transpose(0, 2, 1, 3).reshape(B, H, S, dv)
    return context, attn.reshape(B, H, S, S)


def _reference(Q, K, V, attn_mask):
    scores = jnp.einsum("bhqd,bhkd->bhqk", Q, K) / math.sqrt(Q.shape[-1])
    scores = jnp.where(attn_mask, -1e9, scores)
    attn = jax.nn.softmax(scores, axis=-1)
    context = jnp.einsum("bhqk,bhkd->bhqd", attn, V)
    return context, attn


if __name__ == "__main__":
    key = jax.random.PRNGKey(0)
    kq, kk, kv = jax.random.split(key, 3)

    B, H, S = 2, 2, 8  # small demo shapes; d_k = d_v = 64 per the module
    Q = jax.random.normal(kq, (B, H, S, D_K), dtype=jnp.float32)
    K = jax.random.normal(kk, (B, H, S, D_K), dtype=jnp.float32)
    V = jax.random.normal(kv, (B, H, S, D_V), dtype=jnp.float32)

    # BERT-style padding mask: mask out the last 2 key positions of each batch.
    key_pad = jnp.zeros((B, S), dtype=bool).at[:, -2:].set(True)
    full_pad_mask = jnp.broadcast_to(key_pad[:, None, None, :], (B, H, S, S))
    # A genuinely per-row mask (causal) to exercise the general full-mask path.
    causal = jnp.triu(jnp.ones((S, S), dtype=bool), k=1)
    causal_mask = jnp.broadcast_to(causal[None, None], (B, H, S, S))

    cases = [
        (full_pad_mask, full_pad_mask),   # full mask (collapses to O(S) path)
        (key_pad, full_pad_mask),         # explicit O(S) key-padding fast path
        (causal_mask, causal_mask),       # true per-row full mask path
    ]

    ok = True
    for given_mask, ref_mask in cases:
        ctx_ref, attn_ref = _reference(Q, K, V, ref_mask)
        ctx, attn = scaled_dot_product_attention(Q, K, V, given_mask)
        jax.block_until_ready((ctx, attn))
        # bf16 MXU inputs, bf16 attn output, approx reciprocal => loose tol.
        ok &= bool(jnp.allclose(ctx, ctx_ref, atol=3e-2, rtol=3e-2))
        ok &= bool(jnp.allclose(attn.astype(jnp.float32), attn_ref,
                                atol=2e-2, rtol=2e-2))

    assert ok, "Pallas SDPA kernel mismatch vs. reference"
    print("KERNEL_OK")
</pallas_src>

<mosaic_0001>
module attributes {stable_mosaic.version = 11 : i64} {
  func.func @_sdpa_kernel(%arg0: i32, %arg1: i32, %arg2: memref<4x8x64xbf16, #tpu.memory_space<vmem>>, %arg3: memref<4x8x64xbf16, #tpu.memory_space<vmem>>, %arg4: memref<4x8x64xbf16, #tpu.memory_space<vmem>>, %arg5: memref<4x1x8xi8, #tpu.memory_space<vmem>>, %arg6: memref<1x8x256xf32, #tpu.memory_space<vmem>>, %arg7: memref<4x8x8xbf16, #tpu.memory_space<vmem>>) attributes {dimension_semantics = [#tpu.dimension_semantics<parallel>, #tpu.dimension_semantics<arbitrary>], iteration_bounds = array<i64: 1, 1>, scalar_prefetch = 0 : i64, scratch_operands = 0 : i64, tpu.core_type = #tpu.core_type<tc>, window_params = [{transform_indices = @transform_0, window_bounds = array<i64: 4, 8, 64>}, {transform_indices = @transform_1, window_bounds = array<i64: 4, 8, 64>}, {transform_indices = @transform_2, window_bounds = array<i64: 4, 8, 64>}, {transform_indices = @transform_3, window_bounds = array<i64: 4, 1, 8>}, {transform_indices = @transform_4, window_bounds = array<i64: 1, 8, 256>}, {transform_indices = @transform_5, window_bounds = array<i64: 4, 8, 8>}]} {
    %c0 = arith.constant 0 : index
    %c0_0 = arith.constant 0 : index
    %c0_1 = arith.constant 0 : index
    %0 = vector.load %arg2[%c0, %c0_0, %c0_1] : memref<4x8x64xbf16, #tpu.memory_space<vmem>>, vector<4x8x64xbf16>
    %cst = arith.constant 1.250000e-01 : bf16
    %1 = vector.broadcast %cst : bf16 to vector<4x8x64xbf16>
    %2 = arith.mulf %0, %1 : vector<4x8x64xbf16>
    %c0_2 = arith.constant 0 : index
    %c0_3 = arith.constant 0 : index
    %c0_4 = arith.constant 0 : index
    %3 = vector.load %arg3[%c0_2, %c0_3, %c0_4] : memref<4x8x64xbf16, #tpu.memory_space<vmem>>, vector<4x8x64xbf16>
    %c0_5 = arith.constant 0 : index
    %c0_6 = arith.constant 0 : index
    %c0_7 = arith.constant 0 : index
    %4 = vector.load %arg4[%c0_5, %c0_6, %c0_7] : memref<4x8x64xbf16, #tpu.memory_space<vmem>>, vector<4x8x64xbf16>
    %c0_8 = arith.constant 0 : index
    %c0_9 = arith.constant 0 : index
    %c0_10 = arith.constant 0 : index
    %5 = vector.load %arg5[%c0_8, %c0_9, %c0_10] : memref<4x1x8xi8, #tpu.memory_space<vmem>>, vector<4x1x8xi8>
    %cst_11 = arith.constant dense<0.000000e+00> : vector<4x8x8xf32>
    %6 = tpu.matmul %2, %3, %cst_11 {dimension_numbers = #tpu.dot_dimension_numbers<[2], [2], [1], [1], [0, 0, 0, 1, 1, 1], [0], [0]>} : vector<4x8x64xbf16>, vector<4x8x64xbf16>, vector<4x8x8xf32> -> vector<4x8x8xf32>
    %c0_i8 = arith.constant 0 : i8
    %7 = vector.broadcast %c0_i8 : i8 to vector<4x1x8xi8>
    %8 = arith.cmpi ne, %5, %7 : vector<4x1x8xi8>
    %cst_12 = arith.constant -1.000000e+09 : f32
    %9 = vector.shape_cast %8 : vector<4x1x8xi1> to vector<4x1x8xi1>
    %10 = vector.broadcast %9 : vector<4x1x8xi1> to vector<4x8x8xi1>
    %11 = vector.broadcast %cst_12 : f32 to vector<4x8x8xf32>
    %12 = arith.select %10, %11, %6 : vector<4x8x8xi1>, vector<4x8x8xf32>
    %cst_13 = arith.constant dense<0xFF800000> : vector<4x8xf32>
    %13 = vector.multi_reduction <maximumf>, %12, %cst_13 [2] : vector<4x8x8xf32> to vector<4x8xf32>
    %14 = vector.shape_cast %13 : vector<4x8xf32> to vector<4x8x1xf32>
    %15 = vector.broadcast %14 : vector<4x8x1xf32> to vector<4x8x8xf32>
    %16 = arith.subf %12, %15 : vector<4x8x8xf32>
    %17 = math.exp %16 : vector<4x8x8xf32>
    %cst_14 = arith.constant dense<0.000000e+00> : vector<4x8xf32>
    %18 = vector.multi_reduction <add>, %17, %cst_14 [2] : vector<4x8x8xf32> to vector<4x8xf32>
    %19 = vector.shape_cast %18 : vector<4x8xf32> to vector<4x8x1xf32>
    %20 = tpu.reciprocal %19 {approx = true} : vector<4x8x1xf32> -> vector<4x8x1xf32>
    %21 = vector.broadcast %20 : vector<4x8x1xf32> to vector<4x8x8xf32>
    %22 = arith.mulf %17, %21 : vector<4x8x8xf32>
    %23 = arith.truncf %22 : vector<4x8x8xf32> to vector<4x8x8xbf16>
    %c0_15 = arith.constant 0 : index
    %c0_16 = arith.constant 0 : index
    %c0_17 = arith.constant 0 : index
    %24 = vector.load %arg7[%c0_15, %c0_16, %c0_17] : memref<4x8x8xbf16, #tpu.memory_space<vmem>>, vector<4x8x8xbf16>
    tpu.vector_store %arg7[%c0_15, %c0_16, %c0_17], %23 {strides = array<i32>} : memref<4x8x8xbf16, #tpu.memory_space<vmem>>, vector<4x8x8xbf16>,
    %25 = arith.truncf %22 : vector<4x8x8xf32> to vector<4x8x8xbf16>
    %cst_18 = arith.constant dense<0.000000e+00> : vector<4x8x64xf32>
    %26 = tpu.matmul %25, %4, %cst_18 {dimension_numbers = #tpu.dot_dimension_numbers<[2], [1], [1], [2], [0, 0, 0, 1, 1, 2], [0], [0]>} : vector<4x8x8xbf16>, vector<4x8x64xbf16>, vector<4x8x64xf32> -> vector<4x8x64xf32>
    %27 = vector.extract_strided_slice %26 {offsets = [0, 0, 0], sizes = [1, 8, 64], strides = [1, 1, 1]} : vector<4x8x64xf32> to vector<1x8x64xf32>
    %28 = vector.shape_cast %27 : vector<1x8x64xf32> to vector<8x64xf32>
    %29 = vector.extract_strided_slice %26 {offsets = [1, 0, 0], sizes = [1, 8, 64], strides = [1, 1, 1]} : vector<4x8x64xf32> to vector<1x8x64xf32>
    %30 = vector.shape_cast %29 : vector<1x8x64xf32> to vector<8x64xf32>
    %31 = vector.extract_strided_slice %26 {offsets = [2, 0, 0], sizes = [1, 8, 64], strides = [1, 1, 1]} : vector<4x8x64xf32> to vector<1x8x64xf32>
    %32 = vector.shape_cast %31 : vector<1x8x64xf32> to vector<8x64xf32>
    %33 = vector.extract_strided_slice %26 {offsets = [3, 0, 0], sizes = [1, 8, 64], strides = [1, 1, 1]} : vector<4x8x64xf32> to vector<1x8x64xf32>
    %34 = vector.shape_cast %33 : vector<1x8x64xf32> to vector<8x64xf32>
    %35 = tpu.concatenate %28, %30, %32, %34 in 1 : vector<8x64xf32>, vector<8x64xf32>, vector<8x64xf32>, vector<8x64xf32> -> vector<8x256xf32>
    %c0_19 = arith.constant 0 : index
    %c0_20 = arith.constant 0 : index
    %c0_21 = arith.constant 0 : index
    %36 = vector.load %arg6[%c0_19, %c0_20, %c0_21] : memref<1x8x256xf32, #tpu.memory_space<vmem>>, vector<1x8x256xf32>
    %37 = vector.shape_cast %36 : vector<1x8x256xf32> to vector<8x256xf32>
    %38 = vector.shape_cast %35 : vector<8x256xf32> to vector<1x8x256xf32>
    tpu.vector_store %arg6[%c0_19, %c0_20, %c0_21], %38 {strides = array<i32>} : memref<1x8x256xf32, #tpu.memory_space<vmem>>, vector<1x8x256xf32>,
    return
  }
  func.func @transform_0(%arg0: i32, %arg1: i32) -> (i32, i32, i32) {
    %c0_i32 = arith.constant 0 : i32
    %c0_i32_0 = arith.constant 0 : i32
    return %arg0, %arg1, %c0_i32 : i32, i32, i32
  }
  func.func @transform_1(%arg0: i32, %arg1: i32) -> (i32, i32, i32) {
    %c0_i32 = arith.constant 0 : i32
    %c0_i32_0 = arith.constant 0 : i32
    %c0_i32_1 = arith.constant 0 : i32
    return %arg0, %c0_i32, %c0_i32_0 : i32, i32, i32
  }
  func.func @transform_2(%arg0: i32, %arg1: i32) -> (i32, i32, i32) {
    %c0_i32 = arith.constant 0 : i32
    %c0_i32_0 = arith.constant 0 : i32
    %c0_i32_1 = arith.constant 0 : i32
    return %arg0, %c0_i32, %c0_i32_0 : i32, i32, i32
  }
  func.func @transform_3(%arg0: i32, %arg1: i32) -> (i32, i32, i32) {
    %c0_i32 = arith.constant 0 : i32
    %c0_i32_0 = arith.constant 0 : i32
    %c0_i32_1 = arith.constant 0 : i32
    return %arg0, %c0_i32, %c0_i32_0 : i32, i32, i32
  }
  func.func @transform_4(%arg0: i32, %arg1: i32) -> (i32, i32, i32) {
    %c0_i32 = arith.constant 0 : i32
    %c0_i32_0 = arith.constant 0 : i32
    return %arg0, %arg1, %c0_i32 : i32, i32, i32
  }
  func.func @transform_5(%arg0: i32, %arg1: i32) -> (i32, i32, i32) {
    %c0_i32 = arith.constant 0 : i32
    %c0_i32_0 = arith.constant 0 : i32
    return %arg0, %arg1, %c0_i32 : i32, i32, i32
  }
}

</mosaic_0001>

<llo_original>
// kernel: tpu_custom_call.1
$region0: #{tpu_custom_call.1}
  #allocation0 [shape = 'u32[]', space=smem, size = 0x4, offset = 0x4, fixed_abs, tag = 'smem constant byte address 0x4 - core index']
  #allocation1 [shape = 'u32[144,128]{1,0:T(1,128)}', space=vmem, size = 0x12000, scoped, tag = 'internal scratch']
  %s0 = inlined_call_operand.hbm [shape: bf16[4,8,64], index: 0, kind: input, shape index: {}]
  %s1 = inlined_call_operand.hbm [shape: bf16[4,8,64], index: 1, kind: input, shape index: {}]
  %s2 = inlined_call_operand.hbm [shape: bf16[4,8,64], index: 2, kind: input, shape index: {}]
  %s3 = inlined_call_operand.vmem [shape: s8[4,1,8], index: 3, kind: input, shape index: {}]
  %s4 = inlined_call_operand.hbm [shape: f32[1,8,256], index: 4, kind: output, shape index: {0}]
  %s5 = inlined_call_operand.hbm [shape: bf16[4,8,8], index: 5, kind: output, shape index: {1}]
  %6 = xla_tuple %s4, %s5
  %s7 = sld [smem:[#allocation0]]
  $region46: #{tpu_custom_call.1} parent=0
    _
  %s9 = ssub.s32 1, %s7
  %s10 = scalar_select 0, %s9, %s7
  $region1: #{tpu_custom_call.1} parent=0
    #allocation2 [shape = 'u8[8192]{0}', space=vmem, size = 0x2000, scoped, tag = 'input window, operand 0, single buffered']
    #allocation3 [shape = 's32[1]{0}', space=sflag, size = 0x4, scoped, tag = 'scoped memory for tpu_custom_call.1']
    #allocation4 [shape = 's32[1]{0}', space=sflag, size = 0x4, scoped, tag = 'scoped memory for tpu_custom_call.1']
    #allocation5 [shape = 'u8[8192]{0}', space=vmem, size = 0x2000, scoped, tag = 'input window, operand 1, single buffered']
    #allocation6 [shape = 's32[1]{0}', space=sflag, size = 0x4, scoped, tag = 'scoped memory for tpu_custom_call.1']
    #allocation7 [shape = 'u8[8192]{0}', space=vmem, size = 0x2000, scoped, tag = 'input window, operand 2, single buffered']
    #allocation8 [shape = 'u8[8192]{0}', space=vmem, size = 0x2000, scoped, tag = 'output window, operand 0, single buffered']
    #allocation9 [shape = 'u8[8192]{0}', space=vmem, size = 0x2000, scoped, tag = 'output window, operand 1, single buffered']
    #allocation10 [shape = 's32[1]{0}', space=sflag, size = 0x4, scoped, tag = 'scoped memory for tpu_custom_call.1']
    %11 = vsyncpa [#allocation3], 0
    %12 = vsyncpa [#allocation6], 0
    %13 = vsyncpa [#allocation4], 0
    %14 = vsyncpa [#allocation10], 0
    // Predicated region
    $region2: #{tpu_custom_call.1} parent=1 // pred_check
      _
    $region3: #{tpu_custom_call.1} parent=1 // pred_check_branch
      %16 = sbr.rel (0) target = $region5
    $region4: #{tpu_custom_call.1} parent=1 // pred_region
      %s18 = ssub.s32 256, 256
      %19 = vsyncadd [#allocation3], %s18
      %s20 = sshll.u32 [#allocation2], 4
      %s21 = int_to_ptr.vmem [resolvable:$true] %s20
      %26 = dma.hbm_to_vmem [thread:$0]  %s0, 256, %s21, [#allocation3], 64, 64, 4
    $region5: #{tpu_custom_call.1} parent=1 // pred_fallthru
      _
    // Predicated region
    $region6: #{tpu_custom_call.1} parent=1 // pred_check
      _
    $region7: #{tpu_custom_call.1} parent=1 // pred_check_branch
      %28 = sbr.rel (0) target = $region9
    $region8: #{tpu_custom_call.1} parent=1 // pred_region
      %s30 = ssub.s32 256, 256
      %31 = vsyncadd [#allocation6], %s30
      %s32 = sshll.u32 [#allocation5], 4
      %s33 = int_to_ptr.vmem [resolvable:$true] %s32
      %38 = dma.hbm_to_vmem [thread:$0]  %s1, 256, %s33, [#allocation6], 64, 64, 4
    $region9: #{tpu_custom_call.1} parent=1 // pred_fallthru
      _
    // Predicated region
    $region10: #{tpu_custom_call.1} parent=1 // pred_check
      _
    $region11: #{tpu_custom_call.1} parent=1 // pred_check_branch
      %40 = sbr.rel (0) target = $region13
    $region12: #{tpu_custom_call.1} parent=1 // pred_region
      %s42 = ssub.s32 256, 256
      %43 = vsyncadd [#allocation6], %s42
      %s44 = sshll.u32 [#allocation7], 4
      %s45 = int_to_ptr.vmem [resolvable:$true] %s44
      %50 = dma.hbm_to_vmem [thread:$0]  %s2, 256, %s45, [#allocation6], 64, 64, 4
    $region13: #{tpu_custom_call.1} parent=1 // pred_fallthru
      _
    // Predicated region
    $region14: #{tpu_custom_call.1} parent=1 // pred_check
      _
    $region15: #{tpu_custom_call.1} parent=1 // pred_check_branch
      %52 = sbr.rel (0) target = $region17
    $region16: #{tpu_custom_call.1} parent=1 // pred_region
      _
    $region17: #{tpu_custom_call.1} parent=1 // pred_fallthru
      _
    // Predicated region
    $region18: #{tpu_custom_call.1} parent=1 // pred_check
      _
    $region19: #{tpu_custom_call.1} parent=1 // pred_check_branch
      %54 = sbr.rel (0) target = $region21
    $region20: #{tpu_custom_call.1} parent=1 // pred_region
      %55 = dma.done [#allocation3], 256
    $region21: #{tpu_custom_call.1} parent=1 // pred_fallthru
      _
    // Predicated region
    $region22: #{tpu_custom_call.1} parent=1 // pred_check
      _
    $region23: #{tpu_custom_call.1} parent=1 // pred_check_branch
      %57 = sbr.rel (0) target = $region25
    $region24: #{tpu_custom_call.1} parent=1 // pred_region
      %58 = dma.done [#allocation6], 256
    $region25: #{tpu_custom_call.1} parent=1 // pred_fallthru
      _
    // Predicated region
    $region26: #{tpu_custom_call.1} parent=1 // pred_check
      _
    $region27: #{tpu_custom_call.1} parent=1 // pred_check_branch
      %60 = sbr.rel (0) target = $region29
    $region28: #{tpu_custom_call.1} parent=1 // pred_region
      %61 = dma.done [#allocation6], 256
    $region29: #{tpu_custom_call.1} parent=1 // pred_fallthru
      _
    %v66 = vld [vmem:[#allocation2] sm:$0xf]
    %v67 = vld [vmem:[#allocation2 + $0x4] sm:$0xf]
    %v68 = vld [vmem:[#allocation2 + $0x8] sm:$0xf]
    %v69 = vld [vmem:[#allocation2 + $0xc] sm:$0xf]
    %v70 = vmul.bf16 %v66, 1040203264
    %v71 = vmul.bf16 %v67, 1040203264
    %v72 = vmul.bf16 %v68, 1040203264
    %v73 = vmul.bf16 %v69, 1040203264
    %v74 = vld [vmem:[#allocation5] sm:$0xf]
    %v75 = vld [vmem:[#allocation5 + $0x4] sm:$0xf]
    %v76 = vld [vmem:[#allocation5 + $0x8] sm:$0xf]
    %v77 = vld [vmem:[#allocation5 + $0xc] sm:$0xf]
    %v78 = vld [vmem:[#allocation7] sm:$0xf]
    %v79 = vld [vmem:[#allocation7 + $0x4] sm:$0xf]
    %v80 = vld [vmem:[#allocation7 + $0x8] sm:$0xf]
    %v81 = vld [vmem:[#allocation7 + $0xc] sm:$0xf]
    %v82 = vld [vmem:[%s3] sm:$0x1]
    %v83 = vld [vmem:[%s3 + $0x1] sm:$0x1]
    %v84 = vld [vmem:[%s3 + $0x2] sm:$0x1]
    %v85 = vld [vmem:[%s3 + $0x3] sm:$0x1]
    %vm86 = vcmask 523264
    %v88 = vsel %vm86, %v70, 0
    %v91 = vsel %vm86, %v74, 0
    %93 = vmatprep.subr.bf16.mxu0 0
    %94 = vmatpush1.bf16.xpose.msra.mxu0 %v91
    %95 = vmatprep.subr.bf16.mxu0 0
    %96 = vmatpush1.bf16.xpose.msra.mxu0 0
    %97 = vmatprep.subr.bf16.mxu0 0
    %98 = vmatpush1.bf16.xpose.msra.mxu0 0
    %99 = vmatprep.subr.bf16.mxu0 0
    %100 = vmatpush1.bf16.xpose.msra.mxu0 0
    %101 = vmatprep.subr.bf16.mxu0 0
    %102 = vmatpush1.bf16.xpose.msra.mxu0 0
    %103 = vmatprep.subr.bf16.mxu0 0
    %104 = vmatpush1.bf16.xpose.msra.mxu0 0
    %105 = vmatprep.subr.bf16.mxu0 0
    %106 = vmatpush1.bf16.xpose.msra.mxu0 0
    %107 = vmatprep.subr.bf16.mxu0 0
    %108 = vmatpush1.bf16.xpose.msra.mxu0 0
    %109 = vmatprep.subr.bf16.mxu0 0
    %110 = vmatpush1.bf16.xpose.msra.mxu0 0
    %111 = vmatprep.subr.bf16.mxu0 0
    %112 = vmatpush1.bf16.xpose.msra.mxu0 0
    %113 = vmatprep.subr.bf16.mxu0 0
    %114 = vmatpush1.bf16.xpose.msra.mxu0 0
    %115 = vmatprep.subr.bf16.mxu0 0
    %116 = vmatpush1.bf16.xpose.msra.mxu0 0
    %117 = vmatprep.subr.bf16.mxu0 0
    %118 = vmatpush1.bf16.xpose.msra.mxu0 0
    %119 = vmatprep.subr.bf16.mxu0 0
    %120 = vmatpush1.bf16.xpose.msra.mxu0 0
    %121 = vmatprep.subr.bf16.mxu0 0
    %122 = vmatpush1.bf16.xpose.msra.mxu0 0
    %123 = vmatprep.subr.bf16.mxu0 0
    %124 = vmatpush1.bf16.xpose.msra.mxu0 0
    %125 = vmatprep.mubr.bf16.mxu0 0
    %126 = vmatmul.mubr.bf16.gmra.mrb[0].mxu0 %v88
    %v127 = vpop.f32.mrb[0].mxu0
    %v128 = vadd.f32 0.0, %v127
    %v129 = vpop.f32.mrb[0].mxu0
    %v130 = vpop.f32.mrb[0].mxu0
    %v131 = vpop.f32.mrb[0].mxu0
    %132 = vdwg.mxu0
    %v134 = vsel %vm86, %v71, 0
    %v137 = vsel %vm86, %v75, 0
    %139 = vmatprep.subr.bf16.mxu0 0
    %140 = vmatpush1.bf16.xpose.msra.mxu0 %v137
    %141 = vmatprep.subr.bf16.mxu0 0
    %142 = vmatpush1.bf16.xpose.msra.mxu0 0
    %143 = vmatprep.subr.bf16.mxu0 0
    %144 = vmatpush1.bf16.xpose.msra.mxu0 0
    %145 = vmatprep.subr.bf16.mxu0 0
    %146 = vmatpush1.bf16.xpose.msra.mxu0 0
    %147 = vmatprep.subr.bf16.mxu0 0
    %148 = vmatpush1.bf16.xpose.msra.mxu0 0
    %149 = vmatprep.subr.bf16.mxu0 0
    %150 = vmatpush1.bf16.xpose.msra.mxu0 0
    %151 = vmatprep.subr.bf16.mxu0 0
    %152 = vmatpush1.bf16.xpose.msra.mxu0 0
    %153 = vmatprep.subr.bf16.mxu0 0
    %154 = vmatpush1.bf16.xpose.msra.mxu0 0
    %155 = vmatprep.subr.bf16.mxu0 0
    %156 = vmatpush1.bf16.xpose.msra.mxu0 0
    %157 = vmatprep.subr.bf16.mxu0 0
    %158 = vmatpush1.bf16.xpose.msra.mxu0 0
    %159 = vmatprep.subr.bf16.mxu0 0
    %160 = vmatpush1.bf16.xpose.msra.mxu0 0
    %161 = vmatprep.subr.bf16.mxu0 0
    %162 = vmatpush1.bf16.xpose.msra.mxu0 0
    %163 = vmatprep.subr.bf16.mxu0 0
    %164 = vmatpush1.bf16.xpose.msra.mxu0 0
    %165 = vmatprep.subr.bf16.mxu0 0
    %166 = vmatpush1.bf16.xpose.msra.mxu0 0
    %167 = vmatprep.subr.bf16.mxu0 0
    %168 = vmatpush1.bf16.xpose.msra.mxu0 0
    %169 = vmatprep.subr.bf16.mxu0 0
    %170 = vmatpush1.bf16.xpose.msra.mxu0 0
    %171 = vmatprep.mubr.bf16.mxu0 0
    %172 = vmatmul.mubr.bf16.gmra.mrb[0].mxu0 %v134
    %v173 = vpop.f32.mrb[0].mxu0
    %v174 = vadd.f32 0.0, %v173
    %v175 = vpop.f32.mrb[0].mxu0
    %v176 = vpop.f32.mrb[0].mxu0
    %v177 = vpop.f32.mrb[0].mxu0
    %178 = vdwg.mxu0
    %v180 = vsel %vm86, %v72, 0
    %v183 = vsel %vm86, %v76, 0
    %185 = vmatprep.subr.bf16.mxu0 0
    %186 = vmatpush1.bf16.xpose.msra.mxu0 %v183
    %187 = vmatprep.subr.bf16.mxu0 0
    %188 = vmatpush1.bf16.xpose.msra.mxu0 0
    %189 = vmatprep.subr.bf16.mxu0 0
    %190 = vmatpush1.bf16.xpose.msra.mxu0 0
    %191 = vmatprep.subr.bf16.mxu0 0
    %192 = vmatpush1.bf16.xpose.msra.mxu0 0
    %193 = vmatprep.subr.bf16.mxu0 0
    %194 = vmatpush1.bf16.xpose.msra.mxu0 0
    %195 = vmatprep.subr.bf16.mxu0 0
    %196 = vmatpush1.bf16.xpose.msra.mxu0 0
    %197 = vmatprep.subr.bf16.mxu0 0
    %198 = vmatpush1.bf16.xpose.msra.mxu0 0
    %199 = vmatprep.subr.bf16.mxu0 0
    %200 = vmatpush1.bf16.xpose.msra.mxu0 0
    %201 = vmatprep.subr.bf16.mxu0 0
    %202 = vmatpush1.bf16.xpose.msra.mxu0 0
    %203 = vmatprep.subr.bf16.mxu0 0
    %204 = vmatpush1.bf16.xpose.msra.mxu0 0
    %205 = vmatprep.subr.bf16.mxu0 0
    %206 = vmatpush1.bf16.xpose.msra.mxu0 0
    %207 = vmatprep.subr.bf16.mxu0 0
    %208 = vmatpush1.bf16.xpose.msra.mxu0 0
    %209 = vmatprep.subr.bf16.mxu0 0
    %210 = vmatpush1.bf16.xpose.msra.mxu0 0
    %211 = vmatprep.subr.bf16.mxu0 0
    %212 = vmatpush1.bf16.xpose.msra.mxu0 0
    %213 = vmatprep.subr.bf16.mxu0 0
    %214 = vmatpush1.bf16.xpose.msra.mxu0 0
    %215 = vmatprep.subr.bf16.mxu0 0
    %216 = vmatpush1.bf16.xpose.msra.mxu0 0
    %217 = vmatprep.mubr.bf16.mxu0 0
    %218 = vmatmul.mubr.bf16.gmra.mrb[0].mxu0 %v180
    %v219 = vpop.f32.mrb[0].mxu0
    %v220 = vadd.f32 0.0, %v219
    %v221 = vpop.f32.mrb[0].mxu0
    %v222 = vpop.f32.mrb[0].mxu0
    %v223 = vpop.f32.mrb[0].mxu0
    %224 = vdwg.mxu0
    %v226 = vsel %vm86, %v73, 0
    %v229 = vsel %vm86, %v77, 0
    %231 = vmatprep.subr.bf16.mxu0 0
    %232 = vmatpush1.bf16.xpose.msra.mxu0 %v229
    %233 = vmatprep.subr.bf16.mxu0 0
    %234 = vmatpush1.bf16.xpose.msra.mxu0 0
    %235 = vmatprep.subr.bf16.mxu0 0
    %236 = vmatpush1.bf16.xpose.msra.mxu0 0
    %237 = vmatprep.subr.bf16.mxu0 0
    %238 = vmatpush1.bf16.xpose.msra.mxu0 0
    %239 = vmatprep.subr.bf16.mxu0 0
    %240 = vmatpush1.bf16.xpose.msra.mxu0 0
    %241 = vmatprep.subr.bf16.mxu0 0
    %242 = vmatpush1.bf16.xpose.msra.mxu0 0
    %243 = vmatprep.subr.bf16.mxu0 0
    %244 = vmatpush1.bf16.xpose.msra.mxu0 0
    %245 = vmatprep.subr.bf16.mxu0 0
    %246 = vmatpush1.bf16.xpose.msra.mxu0 0
    %247 = vmatprep.subr.bf16.mxu0 0
    %248 = vmatpush1.bf16.xpose.msra.mxu0 0
    %249 = vmatprep.subr.bf16.mxu0 0
    %250 = vmatpush1.bf16.xpose.msra.mxu0 0
    %251 = vmatprep.subr.bf16.mxu0 0
    %252 = vmatpush1.bf16.xpose.msra.mxu0 0
    %253 = vmatprep.subr.bf16.mxu0 0
    %254 = vmatpush1.bf16.xpose.msra.mxu0 0
    %255 = vmatprep.subr.bf16.mxu0 0
    %256 = vmatpush1.bf16.xpose.msra.mxu0 0
    %257 = vmatprep.subr.bf16.mxu0 0
    %258 = vmatpush1.bf16.xpose.msra.mxu0 0
    %259 = vmatprep.subr.bf16.mxu0 0
    %260 = vmatpush1.bf16.xpose.msra.mxu0 0
    %261 = vmatprep.subr.bf16.mxu0 0
    %262 = vmatpush1.bf16.xpose.msra.mxu0 0
    %263 = vmatprep.mubr.bf16.mxu0 0
    %264 = vmatmul.mubr.bf16.gmra.mrb[0].mxu0 %v226
    %v265 = vpop.f32.mrb[0].mxu0
    %v266 = vadd.f32 0.0, %v265
    %v267 = vpop.f32.mrb[0].mxu0
    %v268 = vpop.f32.mrb[0].mxu0
    %v269 = vpop.f32.mrb[0].mxu0
    %270 = vdwg.mxu0
    %vm271 = vnez %v82
    %vm272 = vnez %v83
    %vm273 = vnez %v84
    %vm274 = vnez %v85
    %v275 = vsel %vm271, 16843009, 0
    %v276 = vsel %vm272, 16843009, 0
    %v277 = vsel %vm273, 16843009, 0
    %v278 = vsel %vm274, 16843009, 0
    %v279 = vunpack.c.0.s8 %v275
    %v280 = vunpack.c.0.s8 %v276
    %v281 = vunpack.c.0.s8 %v277
    %v282 = vunpack.c.0.s8 %v278
    %vm283 = vcmp.ne.s32.totalorder %v279, 0
    %vm284 = vcmp.ne.s32.totalorder %v280, 0
    %vm285 = vcmp.ne.s32.totalorder %v281, 0
    %vm286 = vcmp.ne.s32.totalorder %v282, 0
    %v287 = vsel %vm283, 1, 0
    %v288 = vsel %vm284, 1, 0
    %v289 = vsel %vm285, 1, 0
    %v290 = vsel %vm286, 1, 0
    %v291 = vlaneseq
    %v292 = vshrl.u32 %v291, 7
    %v293 = vsub.s32 0, %v292
    %v294 = vrot.slane %v287, %v293
    %v295 = vlaneseq
    %v296 = vshrl.u32 %v295, 7
    %v297 = vsub.s32 0, %v296
    %v298 = vrot.slane %v288, %v297
    %v299 = vlaneseq
    %v300 = vshrl.u32 %v299, 7
    %v301 = vsub.s32 0, %v300
    %v302 = vrot.slane %v289, %v301
    %v303 = vlaneseq
    %v304 = vshrl.u32 %v303, 7
    %v305 = vsub.s32 0, %v304
    %v306 = vrot.slane %v290, %v305
    %vm307 = vcmp.eq.s32.totalorder %v294, 1
    %vm308 = vcmp.eq.s32.totalorder %v298, 1
    %vm309 = vcmp.eq.s32.totalorder %v302, 1
    %vm310 = vcmp.eq.s32.totalorder %v306, 1
    %v311 = vsel %vm307, -1e+09, %v128
    %v312 = vsel %vm308, -1e+09, %v174
    %v313 = vsel %vm309, -1e+09, %v220
    %v314 = vsel %vm310, -1e+09, %v266
    %vm315 = vcmask 64512
    %v316 = vsel %vm315, %v311, -inf
    %317 = vmax.xlane.f32.xlu0 %v316
    %v318 = vpop.xlane.xlu0 %317
    %v319 = vsel %vm315, %v312, -inf
    %320 = vmax.xlane.f32.xlu0 %v319
    %v321 = vpop.xlane.xlu0 %320
    %v322 = vsel %vm315, %v313, -inf
    %323 = vmax.xlane.f32.xlu0 %v322
    %v324 = vpop.xlane.xlu0 %323
    %v325 = vsel %vm315, %v314, -inf
    %326 = vmax.xlane.f32.xlu0 %v325
    %v327 = vpop.xlane.xlu0 %326
    %v328 = vsub.f32 %v311, %v318
    %v329 = vsub.f32 %v312, %v321
    %v330 = vsub.f32 %v313, %v324
    %v331 = vsub.f32 %v314, %v327
    %v332 = vmul.f32 %v328, 1.442695
    %v333 = vpow.pop %v332
    %v334 = vmul.f32 %v329, 1.442695
    %v335 = vpow.pop %v334
    %v336 = vmul.f32 %v330, 1.442695
    %v337 = vpow.pop %v336
    %v338 = vmul.f32 %v331, 1.442695
    %v339 = vpow.pop %v338
    %v340 = vsel %vm315, %v333, 0.0
    %341 = vadd.xlane.f32.xlu0 %v340
    %v342 = vpop.xlane.xlu0 %341
    %v343 = vsel %vm315, %v335, 0.0
    %344 = vadd.xlane.f32.xlu0 %v343
    %v345 = vpop.xlane.xlu0 %344
    %v346 = vsel %vm315, %v337, 0.0
    %347 = vadd.xlane.f32.xlu0 %v346
    %v348 = vpop.xlane.xlu0 %347
    %v349 = vsel %vm315, %v339, 0.0
    %350 = vadd.xlane.f32.xlu0 %v349
    %v351 = vpop.xlane.xlu0 %350
    %v352 = vrcp.pop %v342
    %v353 = vrcp.pop %v345
    %v354 = vrcp.pop %v348
    %v355 = vrcp.pop %v351
    %v356 = vmul.f32 %v333, %v352
    %v357 = vmul.f32 %v335, %v353
    %v358 = vmul.f32 %v337, %v354
    %v359 = vmul.f32 %v339, %v355
    %v360 = vpack.c.bf16 %v356, %v356
    %v361 = vpack.c.bf16 %v357, %v357
    %v362 = vpack.c.bf16 %v358, %v358
    %v363 = vpack.c.bf16 %v359, %v359
    %vm364 = vcmask 60416
    %365 = vst.msk [vmem:[#allocation9] sm:$0xf] %vm364, %v360
    %366 = vst.msk [vmem:[#allocation9 + $0x4] sm:$0xf] %vm364, %v361
    %367 = vst.msk [vmem:[#allocation9 + $0x8] sm:$0xf] %vm364, %v362
    %368 = vst.msk [vmem:[#allocation9 + $0xc] sm:$0xf] %vm364, %v363
    %v370 = vsel %vm315, %v360, 0
    %vm372 = vcmask 1043456
    %v374 = vsel %vm372, %v78, 0
    %376 = vmatprep.subr.bf16.mxu0 0
    %377 = vmatpush1.bf16.msra.mxu0 %v374
    %378 = vmatprep.subr.bf16.mxu0 0
    %379 = vmatpush1.bf16.msra.mxu0 0
    %380 = vmatprep.subr.bf16.mxu0 0
    %381 = vmatpush1.bf16.msra.mxu0 0
    %382 = vmatprep.subr.bf16.mxu0 0
    %383 = vmatpush1.bf16.msra.mxu0 0
    %384 = vmatprep.subr.bf16.mxu0 0
    %385 = vmatpush1.bf16.msra.mxu0 0
    %386 = vmatprep.subr.bf16.mxu0 0
    %387 = vmatpush1.bf16.msra.mxu0 0
    %388 = vmatprep.subr.bf16.mxu0 0
    %389 = vmatpush1.bf16.msra.mxu0 0
    %390 = vmatprep.subr.bf16.mxu0 0
    %391 = vmatpush1.bf16.msra.mxu0 0
    %392 = vmatprep.subr.bf16.mxu0 0
    %393 = vmatpush1.bf16.msra.mxu0 0
    %394 = vmatprep.subr.bf16.mxu0 0
    %395 = vmatpush1.bf16.msra.mxu0 0
    %396 = vmatprep.subr.bf16.mxu0 0
    %397 = vmatpush1.bf16.msra.mxu0 0
    %398 = vmatprep.subr.bf16.mxu0 0
    %399 = vmatpush1.bf16.msra.mxu0 0
    %400 = vmatprep.subr.bf16.mxu0 0
    %401 = vmatpush1.bf16.msra.mxu0 0
    %402 = vmatprep.subr.bf16.mxu0 0
    %403 = vmatpush1.bf16.msra.mxu0 0
    %404 = vmatprep.subr.bf16.mxu0 0
    %405 = vmatpush1.bf16.msra.mxu0 0
    %406 = vmatprep.subr.bf16.mxu0 0
    %407 = vmatpush1.bf16.msra.mxu0 0
    %408 = vmatprep.mubr.bf16.mxu0 0
    %409 = vmatmul.mubr.bf16.gmra.mrb[0].mxu0 %v370
    %v410 = vpop.f32.mrb[0].mxu0
    %v411 = vadd.f32 0.0, %v410
    %v412 = vpop.f32.mrb[0].mxu0
    %v413 = vpop.f32.mrb[0].mxu0
    %v414 = vpop.f32.mrb[0].mxu0
    %415 = vdwg.mxu0
    %v417 = vsel %vm315, %v361, 0
    %v420 = vsel %vm372, %v79, 0
    %422 = vmatprep.subr.bf16.mxu0 0
    %423 = vmatpush1.bf16.msra.mxu0 %v420
    %424 = vmatprep.subr.bf16.mxu0 0
    %425 = vmatpush1.bf16.msra.mxu0 0
    %426 = vmatprep.subr.bf16.mxu0 0
    %427 = vmatpush1.bf16.msra.mxu0 0
    %428 = vmatprep.subr.bf16.mxu0 0
    %429 = vmatpush1.bf16.msra.mxu0 0
    %430 = vmatprep.subr.bf16.mxu0 0
    %431 = vmatpush1.bf16.msra.mxu0 0
    %432 = vmatprep.subr.bf16.mxu0 0
    %433 = vmatpush1.bf16.msra.mxu0 0
    %434 = vmatprep.subr.bf16.mxu0 0
    %435 = vmatpush1.bf16.msra.mxu0 0
    %436 = vmatprep.subr.bf16.mxu0 0
    %437 = vmatpush1.bf16.msra.mxu0 0
    %438 = vmatprep.subr.bf16.mxu0 0
    %439 = vmatpush1.bf16.msra.mxu0 0
    %440 = vmatprep.subr.bf16.mxu0 0
    %441 = vmatpush1.bf16.msra.mxu0 0
    %442 = vmatprep.subr.bf16.mxu0 0
    %443 = vmatpush1.bf16.msra.mxu0 0
    %444 = vmatprep.subr.bf16.mxu0 0
    %445 = vmatpush1.bf16.msra.mxu0 0
    %446 = vmatprep.subr.bf16.mxu0 0
    %447 = vmatpush1.bf16.msra.mxu0 0
    %448 = vmatprep.subr.bf16.mxu0 0
    %449 = vmatpush1.bf16.msra.mxu0 0
    %450 = vmatprep.subr.bf16.mxu0 0
    %451 = vmatpush1.bf16.msra.mxu0 0
    %452 = vmatprep.subr.bf16.mxu0 0
    %453 = vmatpush1.bf16.msra.mxu0 0
    %454 = vmatprep.mubr.bf16.mxu0 0
    %455 = vmatmul.mubr.bf16.gmra.mrb[0].mxu0 %v417
    %v456 = vpop.f32.mrb[0].mxu0
    %v457 = vadd.f32 0.0, %v456
    %v458 = vpop.f32.mrb[0].mxu0
    %v459 = vpop.f32.mrb[0].mxu0
    %v460 = vpop.f32.mrb[0].mxu0
    %461 = vdwg.mxu0
    %v463 = vsel %vm315, %v362, 0
    %v466 = vsel %vm372, %v80, 0
    %468 = vmatprep.subr.bf16.mxu0 0
    %469 = vmatpush1.bf16.msra.mxu0 %v466
    %470 = vmatprep.subr.bf16.mxu0 0
    %471 = vmatpush1.bf16.msra.mxu0 0
    %472 = vmatprep.subr.bf16.mxu0 0
    %473 = vmatpush1.bf16.msra.mxu0 0
    %474 = vmatprep.subr.bf16.mxu0 0
    %475 = vmatpush1.bf16.msra.mxu0 0
    %476 = vmatprep.subr.bf16.mxu0 0
    %477 = vmatpush1.bf16.msra.mxu0 0
    %478 = vmatprep.subr.bf16.mxu0 0
    %479 = vmatpush1.bf16.msra.mxu0 0
    %480 = vmatprep.subr.bf16.mxu0 0
    %481 = vmatpush1.bf16.msra.mxu0 0
    %482 = vmatprep.subr.bf16.mxu0 0
    %483 = vmatpush1.bf16.msra.mxu0 0
    %484 = vmatprep.subr.bf16.mxu0 0
    %485 = vmatpush1.bf16.msra.mxu0 0
    %486 = vmatprep.subr.bf16.mxu0 0
    %487 = vmatpush1.bf16.msra.mxu0 0
    %488 = vmatprep.subr.bf16.mxu0 0
    %489 = vmatpush1.bf16.msra.mxu0 0
    %490 = vmatprep.subr.bf16.mxu0 0
    %491 = vmatpush1.bf16.msra.mxu0 0
    %492 = vmatprep.subr.bf16.mxu0 0
    %493 = vmatpush1.bf16.msra.mxu0 0
    %494 = vmatprep.subr.bf16.mxu0 0
    %495 = vmatpush1.bf16.msra.mxu0 0
    %496 = vmatprep.subr.bf16.mxu0 0
    %497 = vmatpush1.bf16.msra.mxu0 0
    %498 = vmatprep.subr.bf16.mxu0 0
    %499 = vmatpush1.bf16.msra.mxu0 0
    %500 = vmatprep.mubr.bf16.mxu0 0
    %501 = vmatmul.mubr.bf16.gmra.mrb[0].mxu0 %v463
    %v502 = vpop.f32.mrb[0].mxu0
    %v503 = vadd.f32 0.0, %v502
    %v504 = vpop.f32.mrb[0].mxu0
    %v505 = vpop.f32.mrb[0].mxu0
    %v506 = vpop.f32.mrb[0].mxu0
    %507 = vdwg.mxu0
    %v509 = vsel %vm315, %v363, 0
    %v512 = vsel %vm372, %v81, 0
    %514 = vmatprep.subr.bf16.mxu0 0
    %515 = vmatpush1.bf16.msra.mxu0 %v512
    %516 = vmatprep.subr.bf16.mxu0 0
    %517 = vmatpush1.bf16.msra.mxu0 0
    %518 = vmatprep.subr.bf16.mxu0 0
    %519 = vmatpush1.bf16.msra.mxu0 0
    %520 = vmatprep.subr.bf16.mxu0 0
    %521 = vmatpush1.bf16.msra.mxu0 0
    %522 = vmatprep.subr.bf16.mxu0 0
    %523 = vmatpush1.bf16.msra.mxu0 0
    %524 = vmatprep.subr.bf16.mxu0 0
    %525 = vmatpush1.bf16.msra.mxu0 0
    %526 = vmatprep.subr.bf16.mxu0 0
    %527 = vmatpush1.bf16.msra.mxu0 0
    %528 = vmatprep.subr.bf16.mxu0 0
    %529 = vmatpush1.bf16.msra.mxu0 0
    %530 = vmatprep.subr.bf16.mxu0 0
    %531 = vmatpush1.bf16.msra.mxu0 0
    %532 = vmatprep.subr.bf16.mxu0 0
    %533 = vmatpush1.bf16.msra.mxu0 0
    %534 = vmatprep.subr.bf16.mxu0 0
    %535 = vmatpush1.bf16.msra.mxu0 0
    %536 = vmatprep.subr.bf16.mxu0 0
    %537 = vmatpush1.bf16.msra.mxu0 0
    %538 = vmatprep.subr.bf16.mxu0 0
    %539 = vmatpush1.bf16.msra.mxu0 0
    %540 = vmatprep.subr.bf16.mxu0 0
    %541 = vmatpush1.bf16.msra.mxu0 0
    %542 = vmatprep.subr.bf16.mxu0 0
    %543 = vmatpush1.bf16.msra.mxu0 0
    %544 = vmatprep.subr.bf16.mxu0 0
    %545 = vmatpush1.bf16.msra.mxu0 0
    %546 = vmatprep.mubr.bf16.mxu0 0
    %547 = vmatmul.mubr.bf16.gmra.mrb[0].mxu0 %v509
    %v548 = vpop.f32.mrb[0].mxu0
    %v549 = vadd.f32 0.0, %v548
    %v550 = vpop.f32.mrb[0].mxu0
    %v551 = vpop.f32.mrb[0].mxu0
    %v552 = vpop.f32.mrb[0].mxu0
    %553 = vdwg.mxu0
    %555 = vrot.lane.b32.xlu0 %v457, 64
    %v556 = vpop.permute.xlu0 %555
    %559 = vrot.lane.b32.xlu0 %v549, 64
    %v560 = vpop.permute.xlu0 %559
    %v562 = vsel %vm86, %v411, %v556
    %v563 = vsel %vm86, %v503, %v560
    %564 = vst [vmem:[#allocation8] sm:$0xff] %v562
    %565 = vst [vmem:[#allocation8 + $0x8] sm:$0xff] %v563
    // Predicated region
    $region30: #{tpu_custom_call.1} parent=1 // pred_check
      _
    $region31: #{tpu_custom_call.1} parent=1 // pred_check_branch
      %567 = sbr.rel (0) target = $region33
    $region32: #{tpu_custom_call.1} parent=1 // pred_region
      %s569 = ssub.s32 256, 256
      %570 = vsyncadd [#allocation4], %s569
      %s572 = sshll.u32 [#allocation8], 4
      %s573 = int_to_ptr.vmem [resolvable:$true] %s572
      %575 = dma.vmem_to_hbm [thread:$0]  %s573, 256, %s4, [#allocation4]
    $region33: #{tpu_custom_call.1} parent=1 // pred_fallthru
      _
    // Predicated region
    $region34: #{tpu_custom_call.1} parent=1 // pred_check
      _
    $region35: #{tpu_custom_call.1} parent=1 // pred_check_branch
      %577 = sbr.rel (0) target = $region37
    $region36: #{tpu_custom_call.1} parent=1 // pred_region
      %s579 = ssub.s32 256, 256
      %580 = vsyncadd [#allocation10], %s579
      %s581 = sshll.u32 [#allocation9], 4
      %s582 = int_to_ptr.vmem [resolvable:$true] %s581
      %587 = dma.vmem_to_hbm [thread:$0]  %s582, 256, %s5, [#allocation10], 64, 64, 4
    $region37: #{tpu_custom_call.1} parent=1 // pred_fallthru
      _
    // Predicated region
    $region38: #{tpu_custom_call.1} parent=1 // pred_check
      _
    $region39: #{tpu_custom_call.1} parent=1 // pred_check_branch
      %589 = sbr.rel (0) target = $region41
    $region40: #{tpu_custom_call.1} parent=1 // pred_region
      %590 = dma.done [#allocation4], 256
    $region41: #{tpu_custom_call.1} parent=1 // pred_fallthru
      _
    // Predicated region
    $region42: #{tpu_custom_call.1} parent=1 // pred_check
      _
    $region43: #{tpu_custom_call.1} parent=1 // pred_check_branch
      %592 = sbr.rel (0) target = $region45
    $region44: #{tpu_custom_call.1} parent=1 // pred_region
      %593 = dma.done [#allocation10], 256
    $region45: #{tpu_custom_call.1} parent=1 // pred_fallthru
      _
    %594 = vsyncpa [#allocation3], 1
    %595 = vsyncpa [#allocation6], 1
    %596 = vsyncpa [#allocation4], 1
    %597 = vsyncpa [#allocation10], 1

</llo_original>
